<compile_context>
chip_gen: v6e
topology: v6e:2x2x1
jax: 0.10.0
libtpu: 0.0.40
codegen_flags: <defaults>
</compile_context>

<pallas_src>
import functools

import jax
import jax.numpy as jnp
from jax.experimental import pallas as pl
from jax.experimental.pallas import tpu as pltpu


# ---------------------------------------------------------------------------
# Kernels
# ---------------------------------------------------------------------------
def _conv_bn_relu_drop_kernel(xcol_ref, w_ref, scale_ref, bias_ref, mask_ref,
                              out_ref):
    """out = dropout_mask * relu(bn1(conv1(x)))   for one batch element.

    xcol_ref : (9*C_in, H*W)    im2col'd input
    w_ref    : (C_out, 9*C_in)  conv1 weight as a GEMM matrix
    scale_ref, bias_ref : (C_out, 1)  folded BN1 parameters
    mask_ref : (C_out, H*W)     precomputed inverted-dropout mask
    out_ref  : (C_out, H*W)
    """
    acc = jnp.dot(w_ref[...], xcol_ref[...],
                  preferred_element_type=jnp.float32)            # (C_out, HW)
    h = acc * scale_ref[...] + bias_ref[...]
    h = jnp.maximum(h, 0.0)
    out_ref[...] = (h * mask_ref[...]).astype(out_ref.dtype)


def _conv_bn_se_sd_res_kernel(hcol_ref, w_ref, scale_ref, bias_ref,
                              wse1t_ref, wse2_ref, sd_ref, res_ref, out_ref,
                              *, inv_hw):
    """out = relu(sd_scale * SE(bn2(conv2(h))) + residual)  for one sample.

    hcol_ref  : (9*C_out, H*W)     im2col'd conv1 output
    w_ref     : (C_out, 9*C_out)   conv2 weight as a GEMM matrix
    scale_ref, bias_ref : (C_out, 1)  folded BN2 parameters
    wse1t_ref : (C_out, mid_pad)   SE fc1 weight, transposed + zero padded
    wse2_ref  : (C_out, mid_pad)   SE fc2 weight, zero padded
    sd_ref    : (1, 1)             per-sample stochastic-depth scale
    res_ref   : (C_out, H*W)       residual (block input)
    out_ref   : (C_out, H*W)
    """
    acc = jnp.dot(w_ref[...], hcol_ref[...],
                  preferred_element_type=jnp.float32)            # (C_out, HW)
    h = acc * scale_ref[...] + bias_ref[...]                     # bn2

    # --- SEBlock: global avg pool -> fc1 -> relu -> fc2 -> sigmoid -> gate ---
    pooled = jnp.sum(h, axis=1, keepdims=True) * inv_hw          # (C_out, 1)
    y1 = jnp.sum(wse1t_ref[...] * pooled, axis=0, keepdims=True)  # (1, mid_pad)
    y1 = jnp.maximum(y1, 0.0)
    z = jnp.sum(wse2_ref[...] * y1, axis=1, keepdims=True)       # (C_out, 1)
    gate = 1.0 / (1.0 + jnp.exp(-z))                             # sigmoid
    h = h * gate

    # --- stochastic depth + residual + relu ---
    out = h * sd_ref[...] + res_ref[...]
    out_ref[...] = jnp.maximum(out, 0.0).astype(out_ref.dtype)


# ---------------------------------------------------------------------------
# Host-side layout helpers (pure data movement / parameter folding)
# ---------------------------------------------------------------------------
def _im2col_3x3(x):
    """NCHW (B, C, H, W) -> (B, 9*C, H*W) patches for a stride-1, pad-1 3x3 conv."""
    B, C, H, W = x.shape
    xp = jnp.pad(x, ((0, 0), (0, 0), (1, 1), (1, 1)))
    cols = [xp[:, :, ky:ky + H, kx:kx + W].reshape(B, C, H * W)
            for ky in range(3) for kx in range(3)]
    return jnp.concatenate(cols, axis=1)


def _fold_bn(gamma, beta, mean, var, eps=1e-5):
    """Fold BatchNorm (running stats) into per-channel scale/bias of shape (C, 1)."""
    scale = gamma * jax.lax.rsqrt(var + eps)
    bias = beta - mean * scale
    return (scale.reshape(-1, 1).astype(jnp.float32),
            bias.reshape(-1, 1).astype(jnp.float32))


# ---------------------------------------------------------------------------
# ResidualBlock forward
# ---------------------------------------------------------------------------
def residual_block_forward(x, params, drop_mask=None, sd_scale=None):
    """Forward pass of ResidualBlock (stride=1, downsample=None).

    x         : (B, C, H, W) float32, NCHW like the PyTorch module.
    drop_mask : optional (B, C, H*W) inverted-dropout mask ({0, 1/keep}); ones if None.
    sd_scale  : optional (B,) per-sample stochastic-depth scale ({0, 1/keep}); ones if None.
    """
    # TODO(synk): training-mode BatchNorm (batch statistics) not implemented;
    #             BN uses the provided running stats (inference semantics).
    # TODO(synk): downsample / stride>1 residual path not implemented
    #             (module default is downsample=None).
    B, C_in, H, W = x.shape
    w1 = params["conv1_w"]                       # (C_out, C_in, 3, 3)
    w2 = params["conv2_w"]                       # (C_out, C_out, 3, 3)
    C_out = w1.shape[0]
    HW = H * W
    assert C_in == C_out, "identity residual requires in_channels == out_channels"

    scale1, bias1 = _fold_bn(params["bn1_gamma"], params["bn1_beta"],
                             params["bn1_mean"], params["bn1_var"])
    scale2, bias2 = _fold_bn(params["bn2_gamma"], params["bn2_beta"],
                             params["bn2_mean"], params["bn2_var"])

    # Conv weights as GEMM matrices matching the im2col row order (ky, kx, ci).
    w1_col = jnp.transpose(w1, (0, 2, 3, 1)).reshape(C_out, 9 * C_in)
    w2_col = jnp.transpose(w2, (0, 2, 3, 1)).reshape(C_out, 9 * C_out)

    # SE weights: fc1 transposed, both zero-padded along the tiny `mid` axis.
    w_se1 = params["se_w1"]                      # (mid, C_out)  = Linear(C, C//r)
    w_se2 = params["se_w2"]                      # (C_out, mid)  = Linear(C//r, C)
    mid = w_se1.shape[0]
    mid_pad = max(8, ((mid + 7) // 8) * 8)
    w_se1_tp = jnp.zeros((C_out, mid_pad), jnp.float32).at[:, :mid].set(w_se1.T)
    w_se2_p = jnp.zeros((C_out, mid_pad), jnp.float32).at[:, :mid].set(w_se2)

    if drop_mask is None:
        drop_mask = jnp.ones((B, C_out, HW), jnp.float32)
    if sd_scale is None:
        sd_scale = jnp.ones((B,), jnp.float32)
    drop_mask = drop_mask.reshape(B, C_out, HW).astype(jnp.float32)
    sd_scale = sd_scale.reshape(B, 1, 1).astype(jnp.float32)

    x_col = _im2col_3x3(x)                       # (B, 9*C_in, HW), lane-dense
    residual = x.reshape(B, C_in, HW)

    cparams = pltpu.CompilerParams(
        dimension_semantics=("parallel",),       # independent per-sample work
        vmem_limit_bytes=32 * 1024 * 1024,
    )

    # --- stage 1: conv1 (GEMM) + bn1 + relu + dropout ---
    h1 = pl.pallas_call(
        _conv_bn_relu_drop_kernel,
        out_shape=jax.ShapeDtypeStruct((B, C_out, HW), jnp.float32),
        grid=(B,),
        in_specs=[
            pl.BlockSpec((None, 9 * C_in, HW), lambda b: (b, 0, 0)),
            pl.BlockSpec((C_out, 9 * C_in), lambda b: (0, 0)),
            pl.BlockSpec((C_out, 1), lambda b: (0, 0)),
            pl.BlockSpec((C_out, 1), lambda b: (0, 0)),
            pl.BlockSpec((None, C_out, HW), lambda b: (b, 0, 0)),
        ],
        out_specs=pl.BlockSpec((None, C_out, HW), lambda b: (b, 0, 0)),
        compiler_params=cparams,
    )(x_col, w1_col, scale1, bias1, drop_mask)

    # --- stage 2: conv2 (GEMM) + bn2 + SE + stochastic depth + residual + relu ---
    h1_col = _im2col_3x3(h1.reshape(B, C_out, H, W))     # (B, 9*C_out, HW)

    out = pl.pallas_call(
        functools.partial(_conv_bn_se_sd_res_kernel, inv_hw=1.0 / HW),
        out_shape=jax.ShapeDtypeStruct((B, C_out, HW), jnp.float32),
        grid=(B,),
        in_specs=[
            pl.BlockSpec((None, 9 * C_out, HW), lambda b: (b, 0, 0)),
            pl.BlockSpec((C_out, 9 * C_out), lambda b: (0, 0)),
            pl.BlockSpec((C_out, 1), lambda b: (0, 0)),
            pl.BlockSpec((C_out, 1), lambda b: (0, 0)),
            pl.BlockSpec((C_out, mid_pad), lambda b: (0, 0)),
            pl.BlockSpec((C_out, mid_pad), lambda b: (0, 0)),
            pl.BlockSpec((None, 1, 1), lambda b: (b, 0, 0)),
            pl.BlockSpec((None, C_out, HW), lambda b: (b, 0, 0)),
        ],
        out_specs=pl.BlockSpec((None, C_out, HW), lambda b: (b, 0, 0)),
        compiler_params=cparams,
    )(h1_col, w2_col, scale2, bias2, w_se1_tp, w_se2_p, sd_scale, residual)

    return out.reshape(B, C_out, H, W)


# ---------------------------------------------------------------------------
# Pure-JAX reference (mirrors the PyTorch module, same masks/params)
# ---------------------------------------------------------------------------
def _reference_forward(x, params, drop_mask, sd_scale):
    B, C, H, W = x.shape
    dn = ("NCHW", "OIHW", "NCHW")
    hi = jax.lax.Precision.HIGHEST
    scale1, bias1 = _fold_bn(params["bn1_gamma"], params["bn1_beta"],
                             params["bn1_mean"], params["bn1_var"])
    scale2, bias2 = _fold_bn(params["bn2_gamma"], params["bn2_beta"],
                             params["bn2_mean"], params["bn2_var"])
    out = jax.lax.conv_general_dilated(x, params["conv1_w"], (1, 1), "SAME",
                                       dimension_numbers=dn, precision=hi)
    out = out * scale1.reshape(1, C, 1, 1) + bias1.reshape(1, C, 1, 1)
    out = jnp.maximum(out, 0.0)
    out = out * drop_mask.reshape(B, C, H, W)
    out = jax.lax.conv_general_dilated(out, params["conv2_w"], (1, 1), "SAME",
                                       dimension_numbers=dn, precision=hi)
    out = out * scale2.reshape(1, C, 1, 1) + bias2.reshape(1, C, 1, 1)
    pooled = out.mean(axis=(2, 3))                                   # (B, C)
    y = jnp.maximum(pooled @ params["se_w1"].T, 0.0)                 # (B, mid)
    y = jax.nn.sigmoid(y @ params["se_w2"].T)                        # (B, C)
    out = out * y[:, :, None, None]
    out = out * sd_scale.reshape(B, 1, 1, 1) + x
    return jnp.maximum(out, 0.0)


if __name__ == "__main__":
    # channels=32 so SEBlock's default reduction=16 gives mid = 32 // 16 = 2.
    B, C, H, W = 2, 32, 16, 16
    reduction = 16
    mid = C // reduction
    dropout_p, drop_prob = 0.2, 0.3

    root = jax.random.PRNGKey(0)
    ks = jax.random.split(root, 15)
    x = jax.random.normal(ks[0], (B, C, H, W), jnp.float32)

    params = {
        "conv1_w": jax.random.normal(ks[1], (C, C, 3, 3), jnp.float32) * 0.05,
        "conv2_w": jax.random.normal(ks[2], (C, C, 3, 3), jnp.float32) * 0.05,
        "bn1_gamma": jax.random.uniform(ks[3], (C,), jnp.float32, 0.5, 1.5),
        "bn1_beta": jax.random.normal(ks[4], (C,), jnp.float32) * 0.1,
        "bn1_mean": jax.random.normal(ks[5], (C,), jnp.float32) * 0.1,
        "bn1_var": jax.random.uniform(ks[6], (C,), jnp.float32, 0.5, 1.5),
        "bn2_gamma": jax.random.uniform(ks[7], (C,), jnp.float32, 0.5, 1.5),
        "bn2_beta": jax.random.normal(ks[8], (C,), jnp.float32) * 0.1,
        "bn2_mean": jax.random.normal(ks[9], (C,), jnp.float32) * 0.1,
        "bn2_var": jax.random.uniform(ks[10], (C,), jnp.float32, 0.5, 1.5),
        "se_w1": jax.random.normal(ks[11], (mid, C), jnp.float32) * 0.3,
        "se_w2": jax.random.normal(ks[12], (C, mid), jnp.float32) * 0.3,
    }

    # Training-mode randomness, generated OUTSIDE the kernels (perf feedback).
    keep_d = 1.0 - dropout_p
    drop_mask = (jax.random.bernoulli(ks[13], keep_d, (B, C, H * W))
                 .astype(jnp.float32) / keep_d)
    keep_sd = 1.0 - drop_prob
    sd_scale = (jax.random.bernoulli(ks[14], keep_sd, (B,))
                .astype(jnp.float32) / keep_sd)

    # Training-mode forward (dropout + stochastic depth active).
    out = residual_block_forward(x, params, drop_mask=drop_mask, sd_scale=sd_scale)
    out = jax.block_until_ready(out)

    ref = jax.block_until_ready(_reference_forward(x, params, drop_mask, sd_scale))
    assert out.shape == (B, C, H, W)
    assert bool(jnp.all(jnp.isfinite(out)))
    max_err = float(jnp.max(jnp.abs(out - ref)))
    assert bool(jnp.allclose(out, ref, rtol=3e-2, atol=3e-2)), f"max abs err {max_err}"

    # Eval-mode forward (dropout / stochastic depth = identity) also runs clean.
    out_eval = jax.block_until_ready(residual_block_forward(x, params))
    ref_eval = jax.block_until_ready(
        _reference_forward(x, params,
                           jnp.ones((B, C, H * W), jnp.float32),
                           jnp.ones((B,), jnp.float32)))
    assert bool(jnp.allclose(out_eval, ref_eval, rtol=3e-2, atol=3e-2))

    print("KERNEL_OK")
</pallas_src>

<mosaic_0001>
module attributes {stable_mosaic.version = 11 : i64} {
  func.func @_conv_bn_relu_drop_kernel(%arg0: i32, %arg1: memref<1x288x256xf32, #tpu.memory_space<vmem>>, %arg2: memref<32x288xf32, #tpu.memory_space<vmem>>, %arg3: memref<32x1xf32, #tpu.memory_space<vmem>>, %arg4: memref<32x1xf32, #tpu.memory_space<vmem>>, %arg5: memref<1x32x256xf32, #tpu.memory_space<vmem>>, %arg6: memref<1x32x256xf32, #tpu.memory_space<vmem>>) attributes {dimension_semantics = [#tpu.dimension_semantics<parallel>], iteration_bounds = array<i64: 2>, scalar_prefetch = 0 : i64, scratch_operands = 0 : i64, tpu.core_type = #tpu.core_type<tc>, window_params = [{transform_indices = @transform_0, window_bounds = array<i64: 1, 288, 256>}, {pipeline_mode = #tpu.pipeline_mode<synchronous>, transform_indices = @transform_1, window_bounds = array<i64: 32, 288>}, {pipeline_mode = #tpu.pipeline_mode<synchronous>, transform_indices = @transform_2, window_bounds = array<i64: 32, 1>}, {pipeline_mode = #tpu.pipeline_mode<synchronous>, transform_indices = @transform_3, window_bounds = array<i64: 32, 1>}, {transform_indices = @transform_4, window_bounds = array<i64: 1, 32, 256>}, {transform_indices = @transform_5, window_bounds = array<i64: 1, 32, 256>}]} {
    %c0 = arith.constant 0 : index
    %c0_0 = arith.constant 0 : index
    %0 = vector.load %arg2[%c0, %c0_0] : memref<32x288xf32, #tpu.memory_space<vmem>>, vector<32x288xf32>
    %c0_1 = arith.constant 0 : index
    %c0_2 = arith.constant 0 : index
    %c0_3 = arith.constant 0 : index
    %1 = vector.load %arg1[%c0_1, %c0_2, %c0_3] : memref<1x288x256xf32, #tpu.memory_space<vmem>>, vector<1x288x256xf32>
    %2 = vector.shape_cast %1 : vector<1x288x256xf32> to vector<288x256xf32>
    %cst = arith.constant dense<0.000000e+00> : vector<32x256xf32>
    %3 = tpu.matmul %0, %2, %cst {dimension_numbers = #tpu.dot_dimension_numbers<[1], [0], [0], [1], [0, 0, 1, 1], [], []>} : vector<32x288xf32>, vector<288x256xf32>, vector<32x256xf32> -> vector<32x256xf32>
    %c0_4 = arith.constant 0 : index
    %c0_5 = arith.constant 0 : index
    %4 = vector.load %arg3[%c0_4, %c0_5] : memref<32x1xf32, #tpu.memory_space<vmem>>, vector<32x1xf32>
    %5 = vector.broadcast %4 : vector<32x1xf32> to vector<32x256xf32>
    %6 = arith.mulf %3, %5 : vector<32x256xf32>
    %c0_6 = arith.constant 0 : index
    %c0_7 = arith.constant 0 : index
    %7 = vector.load %arg4[%c0_6, %c0_7] : memref<32x1xf32, #tpu.memory_space<vmem>>, vector<32x1xf32>
    %8 = vector.broadcast %7 : vector<32x1xf32> to vector<32x256xf32>
    %9 = arith.addf %6, %8 : vector<32x256xf32>
    %cst_8 = arith.constant 0.000000e+00 : f32
    %10 = vector.broadcast %cst_8 : f32 to vector<32x256xf32>
    %11 = arith.maximumf %9, %10 : vector<32x256xf32>
    %c0_9 = arith.constant 0 : index
    %c0_10 = arith.constant 0 : index
    %c0_11 = arith.constant 0 : index
    %12 = vector.load %arg5[%c0_9, %c0_10, %c0_11] : memref<1x32x256xf32, #tpu.memory_space<vmem>>, vector<1x32x256xf32>
    %13 = vector.shape_cast %12 : vector<1x32x256xf32> to vector<32x256xf32>
    %14 = arith.mulf %11, %13 : vector<32x256xf32>
    %c0_12 = arith.constant 0 : index
    %c0_13 = arith.constant 0 : index
    %c0_14 = arith.constant 0 : index
    %15 = vector.load %arg6[%c0_12, %c0_13, %c0_14] : memref<1x32x256xf32, #tpu.memory_space<vmem>>, vector<1x32x256xf32>
    %16 = vector.shape_cast %15 : vector<1x32x256xf32> to vector<32x256xf32>
    %17 = vector.shape_cast %14 : vector<32x256xf32> to vector<1x32x256xf32>
    tpu.vector_store %arg6[%c0_12, %c0_13, %c0_14], %17 {strides = array<i32>} : memref<1x32x256xf32, #tpu.memory_space<vmem>>, vector<1x32x256xf32>,
    return
  }
  func.func @transform_0(%arg0: i32) -> (i32, i32, i32) {
    %c0_i32 = arith.constant 0 : i32
    %c0_i32_0 = arith.constant 0 : i32
    %c0_i32_1 = arith.constant 0 : i32
    return %arg0, %c0_i32, %c0_i32_0 : i32, i32, i32
  }
  func.func @transform_1(%arg0: i32) -> (i32, i32) {
    %c0_i32 = arith.constant 0 : i32
    %c0_i32_0 = arith.constant 0 : i32
    %c0_i32_1 = arith.constant 0 : i32
    return %c0_i32, %c0_i32_0 : i32, i32
  }
  func.func @transform_2(%arg0: i32) -> (i32, i32) {
    %c0_i32 = arith.constant 0 : i32
    %c0_i32_0 = arith.constant 0 : i32
    %c0_i32_1 = arith.constant 0 : i32
    return %c0_i32, %c0_i32_0 : i32, i32
  }
  func.func @transform_3(%arg0: i32) -> (i32, i32) {
    %c0_i32 = arith.constant 0 : i32
    %c0_i32_0 = arith.constant 0 : i32
    %c0_i32_1 = arith.constant 0 : i32
    return %c0_i32, %c0_i32_0 : i32, i32
  }
  func.func @transform_4(%arg0: i32) -> (i32, i32, i32) {
    %c0_i32 = arith.constant 0 : i32
    %c0_i32_0 = arith.constant 0 : i32
    %c0_i32_1 = arith.constant 0 : i32
    return %arg0, %c0_i32, %c0_i32_0 : i32, i32, i32
  }
  func.func @transform_5(%arg0: i32) -> (i32, i32, i32) {
    %c0_i32 = arith.constant 0 : i32
    %c0_i32_0 = arith.constant 0 : i32
    %c0_i32_1 = arith.constant 0 : i32
    return %arg0, %c0_i32, %c0_i32_0 : i32, i32, i32
  }
}

</mosaic_0001>

<llo_original>
// kernel: tpu_custom_call.1
$region0: #{tpu_custom_call.1}
  #allocation0 [shape = 'u32[]', space=smem, size = 0x4, offset = 0x4, fixed_abs, tag = 'smem constant byte address 0x4 - core index']
  #allocation1 [shape = 'u32[144,128]{1,0:T(1,128)}', space=vmem, size = 0x12000, scoped, tag = 'internal scratch']
  %s0 = inlined_call_operand.hbm [shape: f32[2,288,256], index: 0, kind: input, shape index: {}]
  %s1 = inlined_call_operand.hbm [shape: f32[32,288], index: 1, kind: input, shape index: {}]
  %s2 = inlined_call_operand.vmem [shape: f32[32,1], index: 2, kind: input, shape index: {}]
  %s3 = inlined_call_operand.vmem [shape: f32[32,1], index: 3, kind: input, shape index: {}]
  %s4 = inlined_call_operand.hbm [shape: f32[2,32,256], index: 4, kind: input, shape index: {}]
  %s5 = inlined_call_operand.hbm [shape: f32[2,32,256], index: 5, kind: output, shape index: {}]
  %s6 = sld [smem:[#allocation0]]
  $region65: #{tpu_custom_call.1} parent=0
    _
  %s8 = ssub.s32 1, %s6
  %s9 = scalar_select 0, %s8, %s6
  $region1: #{tpu_custom_call.1} parent=0
    #allocation2 [shape = 'u8[589824]{0}', space=vmem, size = 0x90000, scoped, tag = 'input window, operand 0']
    #allocation3 [shape = 's32[2]{0}', space=sflag, size = 0x8, scoped, tag = 'scoped memory for tpu_custom_call.1']
    #allocation4 [shape = 's32[2]{0}', space=sflag, size = 0x8, scoped, tag = 'scoped memory for tpu_custom_call.1']
    #allocation5 [shape = 'u8[49152]{0}', space=vmem, size = 0xc000, scoped, tag = 'input window, operand 1, single buffered']
    #allocation6 [shape = 's32[1]{0}', space=sflag, size = 0x4, scoped, tag = 'scoped memory for tpu_custom_call.1']
    #allocation7 [shape = 'u8[65536]{0}', space=vmem, size = 0x10000, scoped, tag = 'input window, operand 4']
    #allocation8 [shape = 'u8[65536]{0}', space=vmem, size = 0x10000, scoped, tag = 'output window, operand 0']
    %10 = vsyncpa [#allocation3], 0
    %s11 = scalar_lea.sflag [#allocation3], 1
    %12 = vsyncpa %s11, 0
    %13 = vsyncpa [#allocation6], 0
    %14 = vsyncpa [#allocation4], 0
    %s15 = scalar_lea.sflag [#allocation4], 1
    %16 = vsyncpa %s15, 0
    loop: start=0, step=1, limit=4
    $region2: #{tpu_custom_call.1} parent=1 // loop_pre_header
      _
    $region3: #{tpu_custom_call.1} parent=1 // loop_header
      %s18 = sphi 0, %s22
      %p19 = scmp.ge.s32.totalorder %s18, 4
      %s28 = sphi 0, %s30
      %s31 = sphi 0, %s28
      %s32 = sphi 0, %s31
      %s48 = sphi 0, %s32
      %s52 = sphi 0, %s52
      %s54 = sphi 0, %s52
      %s55 = sphi 0, %s54
      %s69 = sphi 0, %s55
      %s73 = sphi 0, %s73
      %s75 = sphi 0, %s73
      %s76 = sphi 0, %s75
      %s90 = sphi 0, %s76
      %s94 = sphi 0, %s94
      %s96 = sphi 0, %s94
      %s97 = sphi 0, %s96
      %s111 = sphi 0, %s97
      %s117 = sphi 0, %s119
      %s120 = sphi 0, %s117
      %s121 = sphi 0, %s120
      %s137 = sphi 0, %s121
      %s143 = sphi 0, %s145
      %s146 = sphi 0, %s143
      %s147 = sphi 0, %s146
      %s163 = sphi 0, %s147
    $region4: #{tpu_custom_call.1} parent=1 // loop_header_branch
      %21 = sbr.rel (%p19) target = $region8
    $region5: #{tpu_custom_call.1} parent=1 // loop_body
      %s23 = ssub.s32 %s18, 1
      %s24 = ssub.s32 %s18, 2
      %s25 = sadd.s32 %s18, 1
      %s26 = ssub.s32 %s18, %s25
      %p27 = scmp.eq.s32.totalorder %s26, 0
      %s29 = sadd.s32 %s28, 1
      %s30 = scalar_select %p27, %s28, %s29
      %p33 = pneg %p27
      %p34 = scmp.eq.s32.totalorder %s18, 1
      %p35 = por %p33, %p34
      %p36 = scmp.ne.s32.totalorder %s28, %s31
      %p37 = scmp.eq.s32.totalorder %s18, 0
      %p38 = por %p36, %p37
      %p39 = scmp.ne.s32.totalorder %s28, %s31
      %p40 = scmp.eq.s32.totalorder %s23, 1
      %p41 = por %p39, %p40
      %p42 = scmp.ne.s32.totalorder %s31, %s32
      %p43 = scmp.eq.s32.totalorder %s23, 0
      %p44 = por %p42, %p43
      %p45 = scmp.ne.s32.totalorder %s31, %s32
      %p46 = scmp.eq.s32.totalorder %s24, 1
      %p47 = por %p45, %p46
      %p49 = scmp.ne.s32.totalorder %s32, %s48
      %p50 = scmp.eq.s32.totalorder %s24, 0
      %p51 = por %p49, %p50
      %s53 = sadd.s32 %s52, 1
      %p56 = scmp.eq.s32.totalorder %s18, 1
      %p57 = scmp.ne.s32.totalorder %s52, %s54
      %p58 = scmp.eq.s32.totalorder %s18, 0
      %p59 = por %p57, %p58
      %p60 = scmp.ne.s32.totalorder %s52, %s54
      %p61 = scmp.eq.s32.totalorder %s23, 1
      %p62 = por %p60, %p61
      %p63 = scmp.ne.s32.totalorder %s54, %s55
      %p64 = scmp.eq.s32.totalorder %s23, 0
      %p65 = por %p63, %p64
      %p66 = scmp.ne.s32.totalorder %s54, %s55
      %p67 = scmp.eq.s32.totalorder %s24, 1
      %p68 = por %p66, %p67
      %p70 = scmp.ne.s32.totalorder %s55, %s69
      %p71 = scmp.eq.s32.totalorder %s24, 0
      %p72 = por %p70, %p71
      %s74 = sadd.s32 %s73, 1
      %p77 = scmp.eq.s32.totalorder %s18, 1
      %p78 = scmp.ne.s32.totalorder %s73, %s75
      %p79 = scmp.eq.s32.totalorder %s18, 0
      %p80 = por %p78, %p79
      %p81 = scmp.ne.s32.totalorder %s73, %s75
      %p82 = scmp.eq.s32.totalorder %s23, 1
      %p83 = por %p81, %p82
      %p84 = scmp.ne.s32.totalorder %s75, %s76
      %p85 = scmp.eq.s32.totalorder %s23, 0
      %p86 = por %p84, %p85
      %p87 = scmp.ne.s32.totalorder %s75, %s76
      %p88 = scmp.eq.s32.totalorder %s24, 1
      %p89 = por %p87, %p88
      %p91 = scmp.ne.s32.totalorder %s76, %s90
      %p92 = scmp.eq.s32.totalorder %s24, 0
      %p93 = por %p91, %p92
      %s95 = sadd.s32 %s94, 1
      %p98 = scmp.eq.s32.totalorder %s18, 1
      %p99 = scmp.ne.s32.totalorder %s94, %s96
      %p100 = scmp.eq.s32.totalorder %s18, 0
      %p101 = por %p99, %p100
      %p102 = scmp.ne.s32.totalorder %s94, %s96
      %p103 = scmp.eq.s32.totalorder %s23, 1
      %p104 = por %p102, %p103
      %p105 = scmp.ne.s32.totalorder %s96, %s97
      %p106 = scmp.eq.s32.totalorder %s23, 0
      %p107 = por %p105, %p106
      %p108 = scmp.ne.s32.totalorder %s96, %s97
      %p109 = scmp.eq.s32.totalorder %s24, 1
      %p110 = por %p108, %p109
      %p112 = scmp.ne.s32.totalorder %s97, %s111
      %p113 = scmp.eq.s32.totalorder %s24, 0
      %p114 = por %p112, %p113
      %s115 = ssub.s32 %s18, %s25
      %p116 = scmp.eq.s32.totalorder %s115, 0
      %s118 = sadd.s32 %s117, 1
      %s119 = scalar_select %p116, %s117, %s118
      %p122 = pneg %p116
      %p123 = scmp.eq.s32.totalorder %s18, 1
      %p124 = por %p122, %p123
      %p125 = scmp.ne.s32.totalorder %s117, %s120
      %p126 = scmp.eq.s32.totalorder %s18, 0
      %p127 = por %p125, %p126
      %p128 = scmp.ne.s32.totalorder %s117, %s120
      %p129 = scmp.eq.s32.totalorder %s23, 1
      %p130 = por %p128, %p129
      %p131 = scmp.ne.s32.totalorder %s120, %s121
      %p132 = scmp.eq.s32.totalorder %s23, 0
      %p133 = por %p131, %p132
      %p134 = scmp.ne.s32.totalorder %s120, %s121
      %p135 = scmp.eq.s32.totalorder %s24, 1
      %p136 = por %p134, %p135
      %p138 = scmp.ne.s32.totalorder %s121, %s137
      %p139 = scmp.eq.s32.totalorder %s24, 0
      %p140 = por %p138, %p139
      %s141 = ssub.s32 %s18, %s25
      %p142 = scmp.eq.s32.totalorder %s141, 0
      %s144 = sadd.s32 %s143, 1
      %s145 = scalar_select %p142, %s143, %s144
      %p148 = pneg %p142
      %p149 = scmp.eq.s32.totalorder %s18, 1
      %p150 = por %p148, %p149
      %p151 = scmp.ne.s32.totalorder %s143, %s146
      %p152 = scmp.eq.s32.totalorder %s18, 0
      %p153 = por %p151, %p152
      %p154 = scmp.ne.s32.totalorder %s143, %s146
      %p155 = scmp.eq.s32.totalorder %s23, 1
      %p156 = por %p154, %p155
      %p157 = scmp.ne.s32.totalorder %s146, %s147
      %p158 = scmp.eq.s32.totalorder %s23, 0
      %p159 = por %p157, %p158
      %p160 = scmp.ne.s32.totalorder %s146, %s147
      %p161 = scmp.eq.s32.totalorder %s24, 1
      %p162 = por %p160, %p161
      %p164 = scmp.ne.s32.totalorder %s147, %s163
      %p165 = scmp.eq.s32.totalorder %s24, 0
      %p166 = por %p164, %p165
      %p167 = scmp.le.s32.totalorder 1, %s18
      %p168 = scmp.lt.s32.totalorder %s18, 3
      %p169 = pnand %p167, %p168
      %p170 = pneg %p169
      // Predicated region
      $region9: #{tpu_custom_call.1} parent=5 // pred_check
        _
      $region10: #{tpu_custom_call.1} parent=5 // pred_check_branch
        %172 = sbr.rel (%p169) target = $region12
      $region11: #{tpu_custom_call.1} parent=5 // pred_region
        %s173 = ssub.s32 %s18, 1
        // Predicated region
        $region13: #{tpu_custom_call.1} parent=11 // pred_check
          %p174 = pneg %p65
        $region14: #{tpu_custom_call.1} parent=11 // pred_check_branch
          %176 = sbr.rel (%p174) target = $region16
        $region15: #{tpu_custom_call.1} parent=11 // pred_region
          %s178 = ssub.s32 1536, 1536
          %179 = vsyncadd [#allocation6], %s178
          %s180 = sshll.u32 [#allocation5], 4
          %s181 = int_to_ptr.vmem [resolvable:$true] %s180
          %186 = dma.hbm_to_vmem [thread:$0]  %s1, 1536, %s181, [#allocation6], 384, 384, 24
        $region16: #{tpu_custom_call.1} parent=11 // pred_fallthru
          _
        // Predicated region
        $region17: #{tpu_custom_call.1} parent=11 // pred_check
          %p187 = pneg %p86
        $region18: #{tpu_custom_call.1} parent=11 // pred_check_branch
          %189 = sbr.rel (%p187) target = $region20
        $region19: #{tpu_custom_call.1} parent=11 // pred_region
          _
        $region20: #{tpu_custom_call.1} parent=11 // pred_fallthru
          _
        // Predicated region
        $region21: #{tpu_custom_call.1} parent=11 // pred_check
          %p190 = pneg %p107
        $region22: #{tpu_custom_call.1} parent=11 // pred_check_branch
          %192 = sbr.rel (%p190) target = $region24
        $region23: #{tpu_custom_call.1} parent=11 // pred_region
          _
        $region24: #{tpu_custom_call.1} parent=11 // pred_fallthru
          _
      $region12: #{tpu_custom_call.1} parent=5 // pred_fallthru
        _
      %p193 = scmp.lt.s32.totalorder %s18, 2
      // Predicated region
      $region25: #{tpu_custom_call.1} parent=5 // pred_check
        %p194 = pneg %p193
      $region26: #{tpu_custom_call.1} parent=5 // pred_check_branch
        %196 = sbr.rel (%p194) target = $region28
      $region27: #{tpu_custom_call.1} parent=5 // pred_region
        // Predicated region
        $region29: #{tpu_custom_call.1} parent=27 // pred_check
          %p197 = pneg %p38
        $region30: #{tpu_custom_call.1} parent=27 // pred_check_branch
          %199 = sbr.rel (%p197) target = $region32
        $region31: #{tpu_custom_call.1} parent=27 // pred_region
          %s200 = sand.u32 %s18, 1
          %s201 = scalar_lea.sflag [#allocation3], %s200
          %s202 = sand.u32 %s28, 1
          %s203 = smul.addr %s202, 576
          %s204 = scalar_lea.vmem [#allocation2], %s203
          %s206 = ssub.s32 9216, 9216
          %207 = vsyncadd %s201, %s206
          %s208 = smul.addr %s18, 72
          %s209 = smul.addr %s208, 128
          %s210 = scalar_lea.hbm %s0, %s209
          %s211 = sshll.u32 %s204, 4
          %s212 = int_to_ptr.vmem [resolvable:$true] %s211
          %217 = dma.hbm_to_vmem [thread:$0]  %s210, 9216, %s212, %s201, 256, 256, 16
        $region32: #{tpu_custom_call.1} parent=27 // pred_fallthru
          _
        // Predicated region
        $region33: #{tpu_custom_call.1} parent=27 // pred_check
          %p218 = pneg %p127
        $region34: #{tpu_custom_call.1} parent=27 // pred_check_branch
          %220 = sbr.rel (%p218) target = $region36
        $region35: #{tpu_custom_call.1} parent=27 // pred_region
          %s221 = sand.u32 %s18, 1
          %s222 = scalar_lea.sflag [#allocation3], %s221
          %s223 = sand.u32 %s117, 1
          %s224 = smul.addr %s223, 64
          %s225 = scalar_lea.vmem [#allocation7], %s224
          %s227 = ssub.s32 1024, 1024
          %228 = vsyncadd %s222, %s227
          %s229 = smul.addr %s18, 8
          %s230 = smul.addr %s229, 128
          %s231 = scalar_lea.hbm %s4, %s230
          %s232 = sshll.u32 %s225, 4
          %s233 = int_to_ptr.vmem [resolvable:$true] %s232
          %238 = dma.hbm_to_vmem [thread:$0]  %s231, 1024, %s233, %s222, 256, 256, 16
        $region36: #{tpu_custom_call.1} parent=27 // pred_fallthru
          _
      $region28: #{tpu_custom_call.1} parent=5 // pred_fallthru
        _
      %p239 = scmp.le.s32.totalorder 1, %s18
      %p240 = scmp.lt.s32.totalorder %s18, 3
      %p241 = pnand %p239, %p240
      %p242 = pneg %p241
      // Predicated region
      $region37: #{tpu_custom_call.1} parent=5 // pred_check
        _
      $region38: #{tpu_custom_call.1} parent=5 // pred_check_branch
        %244 = sbr.rel (%p241) target = $region40
      $region39: #{tpu_custom_call.1} parent=5 // pred_region
        %s245 = ssub.s32 %s18, 1
        %s246 = sand.u32 %s23, 1
        %s247 = scalar_lea.sflag [#allocation3], %s246
        %s248 = sand.u32 %s31, 1
        %s249 = smul.addr %s248, 576
        %s250 = scalar_lea.vmem [#allocation2], %s249
        // Predicated region
        $region41: #{tpu_custom_call.1} parent=39 // pred_check
          %p251 = pneg %p44
        $region42: #{tpu_custom_call.1} parent=39 // pred_check_branch
          %253 = sbr.rel (%p251) target = $region44
        $region43: #{tpu_custom_call.1} parent=39 // pred_region
          %254 = dma.done %s247, 9216
        $region44: #{tpu_custom_call.1} parent=39 // pred_fallthru
          _
        // Predicated region
        $region45: #{tpu_custom_call.1} parent=39 // pred_check
          %p255 = pneg %p65
        $region46: #{tpu_custom_call.1} parent=39 // pred_check_branch
          %257 = sbr.rel (%p255) target = $region48
        $region47: #{tpu_custom_call.1} parent=39 // pred_region
          %258 = dma.done [#allocation6], 1536
        $region48: #{tpu_custom_call.1} parent=39 // pred_fallthru
          _
        %s259 = sand.u32 %s23, 1
        %s260 = scalar_lea.sflag [#allocation3], %s259
        %s261 = sand.u32 %s120, 1
        %s262 = smul.addr %s261, 64
        %s263 = scalar_lea.vmem [#allocation7], %s262
        // Predicated region
        $region49: #{tpu_custom_call.1} parent=39 // pred_check
          %p264 = pneg %p133
        $region50: #{tpu_custom_call.1} parent=39 // pred_check_branch
          %266 = sbr.rel (%p264) target = $region52
        $region51: #{tpu_custom_call.1} parent=39 // pred_region
          %267 = dma.done %s260, 1024
        $region52: #{tpu_custom_call.1} parent=39 // pred_fallthru
          _
        %s268 = sand.u32 %s23, 1
        %s269 = scalar_lea.sflag [#allocation3], %s268
        %s270 = sand.u32 %s31, 1
        %s271 = smul.addr %s270, 576
        %s272 = scalar_lea.vmem [#allocation2], %s271
        %p273 = pneg %p44
        %p274 = pneg %p41
        %p275 = pneg %p65
        %p276 = pneg %p62
        %p277 = pneg %p86
        %p278 = pneg %p83
        %p279 = pneg %p107
        %p280 = pneg %p104
        %s281 = sand.u32 %s23, 1
        %s282 = scalar_lea.sflag [#allocation3], %s281
        %s283 = sand.u32 %s120, 1
        %s284 = smul.addr %s283, 64
        %s285 = scalar_lea.vmem [#allocation7], %s284
        %p286 = pneg %p133
        %p287 = pneg %p130
        %p288 = pneg %p159
        %p289 = pneg %p156
        %s290 = sand.u32 %s146, 1
        %s291 = scalar_lea.sflag [#allocation4], %s290
        %s292 = sand.u32 %s146, 1
        %s293 = smul.addr %s292, 64
        %s294 = scalar_lea.vmem [#allocation8], %s293
        %v295 = vld [vmem:[#allocation5] sm:$0xff]
        %v296 = vld [vmem:[#allocation5 + $0x8] sm:$0xff]
        %v297 = vld [vmem:[#allocation5 + $0x10] sm:$0xff]
        %v298 = vld [vmem:[#allocation5 + $0x18] sm:$0xff]
        %v299 = vld [vmem:[#allocation5 + $0x20] sm:$0xff]
        %v300 = vld [vmem:[#allocation5 + $0x28] sm:$0xff]
        %v301 = vld [vmem:[#allocation5 + $0x30] sm:$0xff]
        %v302 = vld [vmem:[#allocation5 + $0x38] sm:$0xff]
        %v303 = vld [vmem:[#allocation5 + $0x40] sm:$0xff]
        %v304 = vld [vmem:[#allocation5 + $0x48] sm:$0xff]
        %v305 = vld [vmem:[#allocation5 + $0x50] sm:$0xff]
        %v306 = vld [vmem:[#allocation5 + $0x58] sm:$0xff]
        %v307 = vld [vmem:[%s250] sm:$0xff]
        %v308 = vld [vmem:[%s250 + $0x8] sm:$0xff]
        %v309 = vld [vmem:[%s250 + $0x10] sm:$0xff]
        %v310 = vld [vmem:[%s250 + $0x18] sm:$0xff]
        %v311 = vld [vmem:[%s250 + $0x20] sm:$0xff]
        %v312 = vld [vmem:[%s250 + $0x28] sm:$0xff]
        %v313 = vld [vmem:[%s250 + $0x30] sm:$0xff]
        %v314 = vld [vmem:[%s250 + $0x38] sm:$0xff]
        %v315 = vld [vmem:[%s250 + $0x40] sm:$0xff]
        %v316 = vld [vmem:[%s250 + $0x48] sm:$0xff]
        %v317 = vld [vmem:[%s250 + $0x50] sm:$0xff]
        %v318 = vld [vmem:[%s250 + $0x58] sm:$0xff]
        %v319 = vld [vmem:[%s250 + $0x60] sm:$0xff]
        %v320 = vld [vmem:[%s250 + $0x68] sm:$0xff]
        %v321 = vld [vmem:[%s250 + $0x70] sm:$0xff]
        %v322 = vld [vmem:[%s250 + $0x78] sm:$0xff]
        %v323 = vld [vmem:[%s250 + $0x80] sm:$0xff]
        %v324 = vld [vmem:[%s250 + $0x88] sm:$0xff]
        %v325 = vld [vmem:[%s250 + $0x90] sm:$0xff]
        %v326 = vld [vmem:[%s250 + $0x98] sm:$0xff]
        %v327 = vld [vmem:[%s250 + $0xa0] sm:$0xff]
        %v328 = vld [vmem:[%s250 + $0xa8] sm:$0xff]
        %v329 = vld [vmem:[%s250 + $0xb0] sm:$0xff]
        %v330 = vld [vmem:[%s250 + $0xb8] sm:$0xff]
        %v331 = vld [vmem:[%s250 + $0xc0] sm:$0xff]
        %v332 = vld [vmem:[%s250 + $0xc8] sm:$0xff]
        %v333 = vld [vmem:[%s250 + $0xd0] sm:$0xff]
        %v334 = vld [vmem:[%s250 + $0xd8] sm:$0xff]
        %v335 = vld [vmem:[%s250 + $0xe0] sm:$0xff]
        %v336 = vld [vmem:[%s250 + $0xe8] sm:$0xff]
        %v337 = vld [vmem:[%s250 + $0xf0] sm:$0xff]
        %v338 = vld [vmem:[%s250 + $0xf8] sm:$0xff]
        %v339 = vld [vmem:[%s250 + $0x100] sm:$0xff]
        %v340 = vld [vmem:[%s250 + $0x108] sm:$0xff]
        %v341 = vld [vmem:[%s250 + $0x110] sm:$0xff]
        %v342 = vld [vmem:[%s250 + $0x118] sm:$0xff]
        %v343 = vld [vmem:[%s250 + $0x120] sm:$0xff]
        %v344 = vld [vmem:[%s250 + $0x128] sm:$0xff]
        %v345 = vld [vmem:[%s250 + $0x130] sm:$0xff]
        %v346 = vld [vmem:[%s250 + $0x138] sm:$0xff]
        %v347 = vld [vmem:[%s250 + $0x140] sm:$0xff]
        %v348 = vld [vmem:[%s250 + $0x148] sm:$0xff]
        %v349 = vld [vmem:[%s250 + $0x150] sm:$0xff]
        %v350 = vld [vmem:[%s250 + $0x158] sm:$0xff]
        %v351 = vld [vmem:[%s250 + $0x160] sm:$0xff]
        %v352 = vld [vmem:[%s250 + $0x168] sm:$0xff]
        %v353 = vld [vmem:[%s250 + $0x170] sm:$0xff]
        %v354 = vld [vmem:[%s250 + $0x178] sm:$0xff]
        %v355 = vld [vmem:[%s250 + $0x180] sm:$0xff]
        %v356 = vld [vmem:[%s250 + $0x188] sm:$0xff]
        %v357 = vld [vmem:[%s250 + $0x190] sm:$0xff]
        %v358 = vld [vmem:[%s250 + $0x198] sm:$0xff]
        %v359 = vld [vmem:[%s250 + $0x1a0] sm:$0xff]
        %v360 = vld [vmem:[%s250 + $0x1a8] sm:$0xff]
        %v361 = vld [vmem:[%s250 + $0x1b0] sm:$0xff]
        %v362 = vld [vmem:[%s250 + $0x1b8] sm:$0xff]
        %v363 = vld [vmem:[%s250 + $0x1c0] sm:$0xff]
        %v364 = vld [vmem:[%s250 + $0x1c8] sm:$0xff]
        %v365 = vld [vmem:[%s250 + $0x1d0] sm:$0xff]
        %v366 = vld [vmem:[%s250 + $0x1d8] sm:$0xff]
        %v367 = vld [vmem:[%s250 + $0x1e0] sm:$0xff]
        %v368 = vld [vmem:[%s250 + $0x1e8] sm:$0xff]
        %v369 = vld [vmem:[%s250 + $0x1f0] sm:$0xff]
        %v370 = vld [vmem:[%s250 + $0x1f8] sm:$0xff]
        %v371 = vld [vmem:[%s250 + $0x200] sm:$0xff]
        %v372 = vld [vmem:[%s250 + $0x208] sm:$0xff]
        %v373 = vld [vmem:[%s250 + $0x210] sm:$0xff]
        %v374 = vld [vmem:[%s250 + $0x218] sm:$0xff]
        %v375 = vld [vmem:[%s250 + $0x220] sm:$0xff]
        %v376 = vld [vmem:[%s250 + $0x228] sm:$0xff]
        %v377 = vld [vmem:[%s250 + $0x230] sm:$0xff]
        %v378 = vld [vmem:[%s250 + $0x238] sm:$0xff]
        %vm379 = vcmask 261120
        %v381 = vsel %vm379, %v297, 0
        %v384 = vsel %vm379, %v300, 0
        %v387 = vsel %vm379, %v303, 0
        %v390 = vsel %vm379, %v306, 0
        %392 = vmatprep.subr.mxu0 %v338
        %393 = vmatpush1.msra.mxu0 %v337
        %394 = vmatprep.subr.mxu0 %v336
        %395 = vmatpush1.msra.mxu0 %v335
        %396 = vmatprep.subr.mxu0 %v334
        %397 = vmatpush1.msra.mxu0 %v333
        %398 = vmatprep.subr.mxu0 %v332
        %399 = vmatpush1.msra.mxu0 %v331
        %400 = vmatprep.subr.mxu0 %v330
        %401 = vmatpush1.msra.mxu0 %v329
        %402 = vmatprep.subr.mxu0 %v328
        %403 = vmatpush1.msra.mxu0 %v327
        %404 = vmatprep.subr.mxu0 %v326
        %405 = vmatpush1.msra.mxu0 %v325
        %406 = vmatprep.subr.mxu0 %v324
        %407 = vmatpush1.msra.mxu0 %v323
        %408 = vmatprep.subr.mxu0 %v322
        %409 = vmatpush1.msra.mxu0 %v321
        %410 = vmatprep.subr.mxu0 %v320
        %411 = vmatpush1.msra.mxu0 %v319
        %412 = vmatprep.subr.mxu0 %v318
        %413 = vmatpush1.msra.mxu0 %v317
        %414 = vmatprep.subr.mxu0 %v316
        %415 = vmatpush1.msra.mxu0 %v315
        %416 = vmatprep.subr.mxu0 %v314
        %417 = vmatpush1.msra.mxu0 %v313
        %418 = vmatprep.subr.mxu0 %v312
        %419 = vmatpush1.msra.mxu0 %v311
        %420 = vmatprep.subr.mxu0 %v310
        %421 = vmatpush1.msra.mxu0 %v309
        %422 = vmatprep.subr.mxu0 %v308
        %423 = vmatpush1.msra.mxu0 %v307
        %424 = vmatprep.subr.mxu0 %v370
        %425 = vmatpush2.msra.mxu0 %v369
        %426 = vmatprep.subr.mxu0 %v368
        %427 = vmatpush2.msra.mxu0 %v367
        %428 = vmatprep.subr.mxu0 %v366
        %429 = vmatpush2.msra.mxu0 %v365
        %430 = vmatprep.subr.mxu0 %v364
        %431 = vmatpush2.msra.mxu0 %v363
        %432 = vmatprep.subr.mxu0 %v362
        %433 = vmatpush2.msra.mxu0 %v361
        %434 = vmatprep.subr.mxu0 %v360
        %435 = vmatpush2.msra.mxu0 %v359
        %436 = vmatprep.subr.mxu0 %v358
        %437 = vmatpush2.msra.mxu0 %v357
        %438 = vmatprep.subr.mxu0 %v356
        %439 = vmatpush2.msra.mxu0 %v355
        %440 = vmatprep.subr.mxu0 %v354
        %441 = vmatpush2.msra.mxu0 %v353
        %442 = vmatprep.subr.mxu0 %v352
        %443 = vmatpush2.msra.mxu0 %v351
        %444 = vmatprep.subr.mxu0 %v350
        %445 = vmatpush2.msra.mxu0 %v349
        %446 = vmatprep.subr.mxu0 %v348
        %447 = vmatpush2.msra.mxu0 %v347
        %448 = vmatprep.subr.mxu0 %v346
        %449 = vmatpush2.msra.mxu0 %v345
        %450 = vmatprep.subr.mxu0 %v344
        %451 = vmatpush2.msra.mxu0 %v343
        %452 = vmatprep.subr.mxu0 %v342
        %453 = vmatpush2.msra.mxu0 %v341
        %454 = vmatprep.subr.mxu0 %v340
        %455 = vmatpush2.msra.mxu0 %v339
        %456 = vmatprep.mubr.f32.mxu0 %v296
        %457 = vmatmul.mubr.f32.gmra.mxu0 %v295
        %v458 = vpop.f32.mrf.mxu0
        %v459 = vadd.f32 0.0, %v458
        %v460 = vpop.f32.mrf.mxu0
        %v461 = vadd.f32 0.0, %v460
        %462 = vmatprep.mubr.f32.mxu0 %v299
        %463 = vmatmul.mubr.f32.gmra.mxu0 %v298
        %v464 = vpop.f32.mrf.mxu0
        %v465 = vadd.f32 0.0, %v464
        %v466 = vpop.f32.mrf.mxu0
        %v467 = vadd.f32 0.0, %v466
        %468 = vmatprep.mubr.f32.mxu0 %v302
        %469 = vmatmul.mubr.f32.gmra.mxu0 %v301
        %v470 = vpop.f32.mrf.mxu0
        %v471 = vadd.f32 0.0, %v470
        %v472 = vpop.f32.mrf.mxu0
        %v473 = vadd.f32 0.0, %v472
        %474 = vmatprep.mubr.f32.mxu0 %v305
        %475 = vmatmul.mubr.f32.gmra.mxu0 %v304
        %v476 = vpop.f32.mrf.mxu0
        %v477 = vadd.f32 0.0, %v476
        %v478 = vpop.f32.mrf.mxu0
        %v479 = vadd.f32 0.0, %v478
        %480 = vdwg.mxu0
        %481 = vmatprep.subr.mxu0 0.0
        %482 = vmatpush1.msra.mxu0 0.0
        %483 = vmatprep.subr.mxu0 0.0
        %484 = vmatpush1.msra.mxu0 0.0
        %485 = vmatprep.subr.mxu0 0.0
        %486 = vmatpush1.msra.mxu0 0.0
        %487 = vmatprep.subr.mxu0 0.0
        %488 = vmatpush1.msra.mxu0 0.0
        %489 = vmatprep.subr.mxu0 0.0
        %490 = vmatpush1.msra.mxu0 0.0
        %491 = vmatprep.subr.mxu0 0.0
        %492 = vmatpush1.msra.mxu0 0.0
        %493 = vmatprep.subr.mxu0 0.0
        %494 = vmatpush1.msra.mxu0 0.0
        %495 = vmatprep.subr.mxu0 0.0
        %496 = vmatpush1.msra.mxu0 0.0
        %497 = vmatprep.subr.mxu0 0.0
        %498 = vmatpush1.msra.mxu0 0.0
        %499 = vmatprep.subr.mxu0 0.0
        %500 = vmatpush1.msra.mxu0 0.0
        %501 = vmatprep.subr.mxu0 0.0
        %502 = vmatpush1.msra.mxu0 0.0
        %503 = vmatprep.subr.mxu0 0.0
        %504 = vmatpush1.msra.mxu0 0.0
        %505 = vmatprep.subr.mxu0 %v378
        %506 = vmatpush1.msra.mxu0 %v377
        %507 = vmatprep.subr.mxu0 %v376
        %508 = vmatpush1.msra.mxu0 %v375
        %509 = vmatprep.subr.mxu0 %v374
        %510 = vmatpush1.msra.mxu0 %v373
        %511 = vmatprep.subr.mxu0 %v372
        %512 = vmatpush1.msra.mxu0 %v371
        %513 = vmatprep.subr.mxu0 0.0
        %514 = vmatpush2.msra.mxu0 0.0
        %515 = vmatprep.subr.mxu0 0.0
        %516 = vmatpush2.msra.mxu0 0.0
        %517 = vmatprep.subr.mxu0 0.0
        %518 = vmatpush2.msra.mxu0 0.0
        %519 = vmatprep.subr.mxu0 0.0
        %520 = vmatpush2.msra.mxu0 0.0
        %521 = vmatprep.subr.mxu0 0.0
        %522 = vmatpush2.msra.mxu0 0.0
        %523 = vmatprep.subr.mxu0 0.0
        %524 = vmatpush2.msra.mxu0 0.0
        %525 = vmatprep.subr.mxu0 0.0
        %526 = vmatpush2.msra.mxu0 0.0
        %527 = vmatprep.subr.mxu0 0.0
        %528 = vmatpush2.msra.mxu0 0.0
        %529 = vmatprep.subr.mxu0 0.0
        %530 = vmatpush2.msra.mxu0 0.0
        %531 = vmatprep.subr.mxu0 0.0
        %532 = vmatpush2.msra.mxu0 0.0
        %533 = vmatprep.subr.mxu0 0.0
        %534 = vmatpush2.msra.mxu0 0.0
        %535 = vmatprep.subr.mxu0 0.0
        %536 = vmatpush2.msra.mxu0 0.0
        %537 = vmatprep.subr.mxu0 0.0
        %538 = vmatpush2.msra.mxu0 0.0
        %539 = vmatprep.subr.mxu0 0.0
        %540 = vmatpush2.msra.mxu0 0.0
        %541 = vmatprep.subr.mxu0 0.0
        %542 = vmatpush2.msra.mxu0 0.0
        %543 = vmatprep.subr.mxu0 0.0
        %544 = vmatpush2.msra.mxu0 0.0
        %545 = vmatprep.mubr.f32.mxu0 0.0
        %546 = vmatmul.mubr.f32.gmra.mxu0 %v381
        %v547 = vpop.f32.mrf.mxu0
        %v548 = vadd.f32 %v459, %v547
        %v549 = vpop.f32.mrf.mxu0
        %v550 = vadd.f32 %v461, %v549
        %551 = vmatprep.mubr.f32.mxu0 0.0
        %552 = vmatmul.mubr.f32.gmra.mxu0 %v384
        %v553 = vpop.f32.mrf.mxu0
        %v554 = vadd.f32 %v465, %v553
        %v555 = vpop.f32.mrf.mxu0
        %v556 = vadd.f32 %v467, %v555
        %557 = vmatprep.mubr.f32.mxu0 0.0
        %558 = vmatmul.mubr.f32.gmra.mxu0 %v387
        %v559 = vpop.f32.mrf.mxu0
        %v560 = vadd.f32 %v471, %v559
        %v561 = vpop.f32.mrf.mxu0
        %v562 = vadd.f32 %v473, %v561
        %563 = vmatprep.mubr.f32.mxu0 0.0
        %564 = vmatmul.mubr.f32.gmra.mxu0 %v390
        %v565 = vpop.f32.mrf.mxu0
        %v566 = vadd.f32 %v477, %v565
        %v567 = vpop.f32.mrf.mxu0
        %v568 = vadd.f32 %v479, %v567
        %569 = vdwg.mxu0
        %v570 = vld [vmem:[%s2] sm:$0xff]
        %v571 = vld [vmem:[%s2 + $0x8] sm:$0xff]
        %v572 = vld [vmem:[%s2 + $0x10] sm:$0xff]
        %v573 = vld [vmem:[%s2 + $0x18] sm:$0xff]
        %575 = vset.pattern.permute.xlu0 0
        %576 = vperm.xlu0 %575, %v570
        %v577 = vpop.permute.xlu0 %576
        %580 = vset.pattern.permute.xlu0 0
        %581 = vperm.xlu0 %580, %v571
        %v582 = vpop.permute.xlu0 %581
        %585 = vset.pattern.permute.xlu0 0
        %586 = vperm.xlu0 %585, %v572
        %v587 = vpop.permute.xlu0 %586
        %590 = vset.pattern.permute.xlu0 0
        %591 = vperm.xlu0 %590, %v573
        %v592 = vpop.permute.xlu0 %591
        %v594 = vmul.f32 %v548, %v577
        %v595 = vmul.f32 %v550, %v577
        %v596 = vmul.f32 %v554, %v582
        %v597 = vmul.f32 %v556, %v582
        %v598 = vmul.f32 %v560, %v587
        %v599 = vmul.f32 %v562, %v587
        %v600 = vmul.f32 %v566, %v592
        %v601 = vmul.f32 %v568, %v592
        %v602 = vld [vmem:[%s3] sm:$0xff]
        %v603 = vld [vmem:[%s3 + $0x8] sm:$0xff]
        %v604 = vld [vmem:[%s3 + $0x10] sm:$0xff]
        %v605 = vld [vmem:[%s3 + $0x18] sm:$0xff]
        %607 = vset.pattern.permute.xlu0 0
        %608 = vperm.xlu0 %607, %v602
        %v609 = vpop.permute.xlu0 %608
        %612 = vset.pattern.permute.xlu0 0
        %613 = vperm.xlu0 %612, %v603
        %v614 = vpop.permute.xlu0 %613
        %617 = vset.pattern.permute.xlu0 0
        %618 = vperm.xlu0 %617, %v604
        %v619 = vpop.permute.xlu0 %618
        %622 = vset.pattern.permute.xlu0 0
        %623 = vperm.xlu0 %622, %v605
        %v624 = vpop.permute.xlu0 %623
        %v626 = vadd.f32 %v594, %v609
        %v627 = vadd.f32 %v595, %v609
        %v628 = vadd.f32 %v596, %v614
        %v629 = vadd.f32 %v597, %v614
        %v630 = vadd.f32 %v598, %v619
        %v631 = vadd.f32 %v599, %v619
        %v632 = vadd.f32 %v600, %v624
        %v633 = vadd.f32 %v601, %v624
        %v634 = vmax.f32 %v626, 0.0
        %v635 = vmax.f32 %v627, 0.0
        %v636 = vmax.f32 %v628, 0.0
        %v637 = vmax.f32 %v629, 0.0
        %v638 = vmax.f32 %v630, 0.0
        %v639 = vmax.f32 %v631, 0.0
        %v640 = vmax.f32 %v632, 0.0
        %v641 = vmax.f32 %v633, 0.0
        %v642 = vld [vmem:[%s263] sm:$0xff]
        %v643 = vld [vmem:[%s263 + $0x8] sm:$0xff]
        %v644 = vld [vmem:[%s263 + $0x10] sm:$0xff]
        %v645 = vld [vmem:[%s263 + $0x18] sm:$0xff]
        %v646 = vld [vmem:[%s263 + $0x20] sm:$0xff]
        %v647 = vld [vmem:[%s263 + $0x28] sm:$0xff]
        %v648 = vld [vmem:[%s263 + $0x30] sm:$0xff]
        %v649 = vld [vmem:[%s263 + $0x38] sm:$0xff]
        %v650 = vmul.f32 %v634, %v642
        %v651 = vmul.f32 %v635, %v643
        %v652 = vmul.f32 %v636, %v644
        %v653 = vmul.f32 %v637, %v645
        %v654 = vmul.f32 %v638, %v646
        %v655 = vmul.f32 %v639, %v647
        %v656 = vmul.f32 %v640, %v648
        %v657 = vmul.f32 %v641, %v649
        %658 = vst [vmem:[%s294] sm:$0xff] %v650
        %659 = vst [vmem:[%s294 + $0x8] sm:$0xff] %v651
        %660 = vst [vmem:[%s294 + $0x10] sm:$0xff] %v652
        %661 = vst [vmem:[%s294 + $0x18] sm:$0xff] %v653
        %662 = vst [vmem:[%s294 + $0x20] sm:$0xff] %v654
        %663 = vst [vmem:[%s294 + $0x28] sm:$0xff] %v655
        %664 = vst [vmem:[%s294 + $0x30] sm:$0xff] %v656
        %665 = vst [vmem:[%s294 + $0x38] sm:$0xff] %v657
        %s666 = sand.u32 %s146, 1
        %s667 = scalar_lea.sflag [#allocation4], %s666
        %s668 = sand.u32 %s146, 1
        %s669 = smul.addr %s668, 64
        %s670 = scalar_lea.vmem [#allocation8], %s669
        // Predicated region
        $region53: #{tpu_custom_call.1} parent=39 // pred_check
          %p671 = pneg %p156
        $region54: #{tpu_custom_call.1} parent=39 // pred_check_branch
          %673 = sbr.rel (%p671) target = $region56
        $region55: #{tpu_custom_call.1} parent=39 // pred_region
          %s675 = ssub.s32 1024, 1024
          %676 = vsyncadd %s667, %s675
          %s677 = smul.addr %s23, 8
          %s678 = smul.addr %s677, 128
          %s679 = scalar_lea.hbm %s5, %s678
          %s680 = sshll.u32 %s670, 4
          %s681 = int_to_ptr.vmem [resolvable:$true] %s680
          %686 = dma.vmem_to_hbm [thread:$0]  %s681, 1024, %s679, %s667, 256, 256, 16
        $region56: #{tpu_custom_call.1} parent=39 // pred_fallthru
          _
      $region40: #{tpu_custom_call.1} parent=5 // pred_fallthru
        _
      %p687 = scmp.le.s32.totalorder 2, %s18
      // Predicated region
      $region57: #{tpu_custom_call.1} parent=5 // pred_check
        %p688 = pneg %p687
      $region58: #{tpu_custom_call.1} parent=5 // pred_check_branch
        %690 = sbr.rel (%p688) target = $region60
      $region59: #{tpu_custom_call.1} parent=5 // pred_region
        %s691 = ssub.s32 %s18, 2
        // Predicated region
        $region61: #{tpu_custom_call.1} parent=59 // pred_check
          %p692 = pneg %p162
        $region62: #{tpu_custom_call.1} parent=59 // pred_check_branch
          %694 = sbr.rel (%p692) target = $region64
        $region63: #{tpu_custom_call.1} parent=59 // pred_region
          %s695 = sand.u32 %s147, 1
          %s696 = scalar_lea.sflag [#allocation4], %s695
          %s697 = sand.u32 %s147, 1
          %s698 = smul.addr %s697, 64
          %s699 = scalar_lea.vmem [#allocation8], %s698
          %700 = dma.done %s696, 1024
        $region64: #{tpu_custom_call.1} parent=59 // pred_fallthru
          _
      $region60: #{tpu_custom_call.1} parent=5 // pred_fallthru
        _
    $region6: #{tpu_custom_call.1} parent=1 // loop_footer
      %s22 = sadd.s32 1, %s18
    $region7: #{tpu_custom_call.1} parent=1 // loop_footer_branch
      %17 = sbr.rel target = $region3
    $region8: #{tpu_custom_call.1} parent=1 // loop_exit
      _
    %701 = vsyncpa [#allocation3], 1
    %s702 = scalar_lea.sflag [#allocation3], 1
    %703 = vsyncpa %s702, 1
    %704 = vsyncpa [#allocation6], 1
    %705 = vsyncpa [#allocation4], 1
    %s706 = scalar_lea.sflag [#allocation4], 1
    %707 = vsyncpa %s706, 1

</llo_original>
